<compile_context>
chip_gen: v7x
topology: tpu7x:2x2x1
jax: 0.10.0
libtpu: 0.0.40
codegen_flags: <defaults>
</compile_context>

<pallas_src>
import math

import jax
import jax.numpy as jnp
from jax.experimental import pallas as pl
from jax.experimental.pallas import tpu as pltpu

LANE = 128
_MIB = 1024 * 1024


def _relu_kernel(x_ref, o_ref):
    o_ref[...] = jnp.maximum(x_ref[...], jnp.zeros((), x_ref.dtype))


def _round_up(v, m):
    return ((v + m - 1) // m) * m


def _target_tile_bytes():
    """~4 MiB tiles by default (safe under v7x's 64 MiB/TC VMEM); go to
    8 MiB on 128 MiB-VMEM generations (v5e/v6e) to amortize per-step cost."""
    try:
        vmem = int(pltpu.get_tpu_info().vmem_capacity_bytes)
    except Exception:
        return 4 * _MIB
    return 8 * _MIB if vmem >= 96 * _MIB else 4 * _MIB


def _choose_2d_view(n, sublane):
    """Pick (rows, cols) with rows * cols == n maximizing lane utilization.

    Preference order: enough rows to fill the sublanes, then lane density of
    the cols axis (drives unmasked `vst` stores and minimal VMEM lane
    padding), then a squarer aspect ratio (more row blocks for pipelining).
    The reshape itself is a contiguous dim regroup -> no data movement.
    """
    divs = set()
    i = 1
    while i * i <= n:
        if n % i == 0:
            divs.add(i)
            divs.add(n // i)
        i += 1
    best_key, best_rc = None, (n, 1)
    for c in sorted(divs):
        r = n // c
        util = c / _round_up(c, LANE)
        key = (r >= sublane, round(util, 6), min(r, c))
        if best_key is None or key > best_key:
            best_key, best_rc = key, (r, c)
    return best_rc


def relu_pallas(x: jax.Array) -> jax.Array:
    """Elementwise ReLU via a Pallas TPU kernel (any shape / dtype)."""
    orig_shape = x.shape
    dtype = x.dtype
    n = int(math.prod(orig_shape)) if orig_shape else 1

    if n == 0:
        # Empty tensor: nothing to compute.
        return x

    itemsize = jnp.dtype(dtype).itemsize
    # Sub-32-bit dtypes pack along sublanes (8 for f32, 16 for bf16, 32 int8).
    sublane = 8 * max(1, 4 // itemsize)
    target = _target_tile_bytes()

    rows, cols = _choose_2d_view(n, sublane)
    x2d = x.reshape(rows, cols)

    # --- column blocking (usually a single full-width block) ---
    cols_pad = _round_up(cols, LANE)
    if sublane * cols_pad * itemsize <= target:
        block_cols = cols  # full extent: no lane divisibility requirement
    else:
        # A sublane-high full-width strip would blow the tile budget: tile the
        # lane axis with a multiple-of-128 block (last partial block masked).
        block_cols = max(LANE, (target // (sublane * itemsize)) // LANE * LANE)
    bc_pad = _round_up(block_cols, LANE)
    row_bytes = bc_pad * itemsize

    # --- row blocking: ~target-sized, sublane-aligned tiles ---
    if rows <= sublane:
        block_rows = rows
    else:
        block_rows = max(sublane, (target // row_bytes) // sublane * sublane)
        if block_rows >= rows:
            block_rows = rows  # single full-extent row block

    col_steps = pl.cdiv(cols, block_cols)
    row_steps = pl.cdiv(rows, block_rows)

    # Keep the software pipeline (and both v7x TensorCores) fed on large
    # tensors; small tensors stay single-step so the single-TC v5e/v6e parts
    # pay no extra per-step overhead.
    real_bytes = n * itemsize
    if real_bytes > 8 * _MIB and row_steps * col_steps < 4 and rows > 4 * sublane:
        want_row_steps = pl.cdiv(4, col_steps)
        block_rows = max(sublane, _round_up(pl.cdiv(rows, want_row_steps), sublane))
        if block_rows >= rows:
            block_rows = rows
        row_steps = pl.cdiv(rows, block_rows)

    grid = (row_steps, col_steps)

    # in + out tiles, double-buffered, plus headroom; sized to need but still
    # explicit so large tiles clear the default scoped limit on v5e/v6e.
    tile_bytes = _round_up(block_rows, sublane) * bc_pad * itemsize
    vmem_limit = int(min(40 * _MIB, 5 * tile_bytes + 4 * _MIB))

    out2d = pl.pallas_call(
        _relu_kernel,
        out_shape=jax.ShapeDtypeStruct((rows, cols), dtype),
        grid_spec=pltpu.PrefetchScalarGridSpec(
            num_scalar_prefetch=0,
            grid=grid,
            in_specs=[pl.BlockSpec((block_rows, block_cols), lambda i, j: (i, j))],
            out_specs=pl.BlockSpec((block_rows, block_cols), lambda i, j: (i, j)),
        ),
        compiler_params=pltpu.CompilerParams(
            dimension_semantics=("parallel", "parallel"),
            vmem_limit_bytes=vmem_limit,
        ),
        # input_output_aliases intentionally omitted: outside a donating jit it
        # only makes XLA insert a defensive copy of the input.
    )(x2d)

    return out2d.reshape(orig_shape)


if __name__ == "__main__":
    # Shape from the original module's forward: ReLU over a (1, 3024, 7, 7) map.
    x = jax.random.normal(jax.random.PRNGKey(0), (1, 3024, 7, 7), dtype=jnp.float32)
    y = relu_pallas(x)
    jax.block_until_ready(y)

    ref = jnp.maximum(x, 0.0)
    assert y.shape == x.shape and y.dtype == x.dtype
    assert jnp.array_equal(y, ref)

    # Also exercise the exactly-lane-dense path (element count % 128 == 0).
    x2 = jax.random.normal(jax.random.PRNGKey(1), (2, 64, 16, 16), dtype=jnp.float32)
    y2 = relu_pallas(x2)
    jax.block_until_ready(y2)
    assert jnp.array_equal(y2, jnp.maximum(x2, 0.0))

    print("KERNEL_OK")
</pallas_src>

<mosaic_0001>
module attributes {stable_mosaic.version = 11 : i64} {
  func.func @_relu_kernel(%arg0: i32, %arg1: i32, %arg2: memref<8x18522xf32, #tpu.memory_space<vmem>>, %arg3: memref<8x18522xf32, #tpu.memory_space<vmem>>) attributes {dimension_semantics = [#tpu.dimension_semantics<parallel>, #tpu.dimension_semantics<parallel>], iteration_bounds = array<i64: 1, 1>, scalar_prefetch = 0 : i64, scratch_operands = 0 : i64, tpu.core_type = #tpu.core_type<tc>, window_params = [{transform_indices = @transform_0, window_bounds = array<i64: 8, 18522>}, {transform_indices = @transform_1, window_bounds = array<i64: 8, 18522>}]} {
    %c0 = arith.constant 0 : index
    %c0_0 = arith.constant 0 : index
    %0 = vector.load %arg2[%c0, %c0_0] : memref<8x18522xf32, #tpu.memory_space<vmem>>, vector<8x18522xf32>
    %cst = arith.constant 0.000000e+00 : f32
    %1 = vector.broadcast %cst : f32 to vector<8x18522xf32>
    %2 = arith.maximumf %0, %1 : vector<8x18522xf32>
    %c0_1 = arith.constant 0 : index
    %c0_2 = arith.constant 0 : index
    %3 = vector.load %arg3[%c0_1, %c0_2] : memref<8x18522xf32, #tpu.memory_space<vmem>>, vector<8x18522xf32>
    tpu.vector_store %arg3[%c0_1, %c0_2], %2 {strides = array<i32>} : memref<8x18522xf32, #tpu.memory_space<vmem>>, vector<8x18522xf32>,
    return
  }
  func.func @transform_0(%arg0: i32, %arg1: i32) -> (i32, i32) {
    %c0_i32 = arith.constant 0 : i32
    return %arg0, %arg1 : i32, i32
  }
  func.func @transform_1(%arg0: i32, %arg1: i32) -> (i32, i32) {
    %c0_i32 = arith.constant 0 : i32
    return %arg0, %arg1 : i32, i32
  }
}

</mosaic_0001>

<llo_original>
// kernel: tpu_custom_call.1
$region0: #{tpu_custom_call.1}
  #allocation0 [shape = 'u32[]', space=smem, size = 0x4, offset = 0x4, fixed_abs, tag = 'smem constant byte address 0x4 - core index']
  #allocation1 [shape = 'u32[144,128]{1,0:T(1,128)}', space=vmem, size = 0x12000, scoped, tag = 'internal scratch']
  %s0 = inlined_call_operand.hbm [shape: f32[8,18522], index: 0, kind: input, shape index: {}]
  %s1 = inlined_call_operand.hbm [shape: f32[8,18522], index: 1, kind: output, shape index: {}]
  %s2 = sld [smem:[#allocation0]]
  $region18: #{tpu_custom_call.1} parent=0
    _
  %s4 = ssub.s32 1, %s2
  %s5 = scalar_select 0, %s4, %s2
  $region1: #{tpu_custom_call.1} parent=0
    #allocation2 [shape = 'u8[593920]{0}', space=vmem, size = 0x91000, scoped, tag = 'input window, operand 0, single buffered']
    #allocation3 [shape = 's32[1]{0}', space=sflag, size = 0x4, scoped, tag = 'scoped memory for tpu_custom_call.1']
    #allocation4 [shape = 's32[1]{0}', space=sflag, size = 0x4, scoped, tag = 'scoped memory for tpu_custom_call.1']
    #allocation5 [shape = 'u8[593920]{0}', space=vmem, size = 0x91000, scoped, tag = 'output window, operand 0, single buffered']
    %6 = vsyncpa [#allocation3], 0
    %7 = vsyncpa [#allocation4], 0
    // Predicated region
    $region2: #{tpu_custom_call.1} parent=1 // pred_check
      _
    $region3: #{tpu_custom_call.1} parent=1 // pred_check_branch
      %9 = sbr.rel (0) target = $region5
    $region4: #{tpu_custom_call.1} parent=1 // pred_region
      %s11 = ssub.s32 18560, 18560
      %12 = vsyncadd [#allocation3], %s11
      %s14 = sshll.u32 [#allocation2], 4
      %s15 = int_to_ptr.vmem [resolvable:$true] %s14
      %17 = dma.hbm_to_vmem [thread:$0]  %s0, 18560, %s15, [#allocation3]
    $region5: #{tpu_custom_call.1} parent=1 // pred_fallthru
      _
    // Predicated region
    $region6: #{tpu_custom_call.1} parent=1 // pred_check
      _
    $region7: #{tpu_custom_call.1} parent=1 // pred_check_branch
      %19 = sbr.rel (0) target = $region9
    $region8: #{tpu_custom_call.1} parent=1 // pred_region
      %20 = dma.done [#allocation3], 18560
    $region9: #{tpu_custom_call.1} parent=1 // pred_fallthru
      _
    %v21 = vld [vmem:[#allocation2] sm:$0xff]
    %v22 = vld [vmem:[#allocation2 + $0x8] sm:$0xff]
    %v23 = vld [vmem:[#allocation2 + $0x10] sm:$0xff]
    %v24 = vld [vmem:[#allocation2 + $0x18] sm:$0xff]
    %v25 = vld [vmem:[#allocation2 + $0x20] sm:$0xff]
    %v26 = vld [vmem:[#allocation2 + $0x28] sm:$0xff]
    %v27 = vld [vmem:[#allocation2 + $0x30] sm:$0xff]
    %v28 = vld [vmem:[#allocation2 + $0x38] sm:$0xff]
    %v29 = vld [vmem:[#allocation2 + $0x40] sm:$0xff]
    %v30 = vld [vmem:[#allocation2 + $0x48] sm:$0xff]
    %v31 = vld [vmem:[#allocation2 + $0x50] sm:$0xff]
    %v32 = vld [vmem:[#allocation2 + $0x58] sm:$0xff]
    %v33 = vld [vmem:[#allocation2 + $0x60] sm:$0xff]
    %v34 = vld [vmem:[#allocation2 + $0x68] sm:$0xff]
    %v35 = vld [vmem:[#allocation2 + $0x70] sm:$0xff]
    %v36 = vld [vmem:[#allocation2 + $0x78] sm:$0xff]
    %v37 = vld [vmem:[#allocation2 + $0x80] sm:$0xff]
    %v38 = vld [vmem:[#allocation2 + $0x88] sm:$0xff]
    %v39 = vld [vmem:[#allocation2 + $0x90] sm:$0xff]
    %v40 = vld [vmem:[#allocation2 + $0x98] sm:$0xff]
    %v41 = vld [vmem:[#allocation2 + $0xa0] sm:$0xff]
    %v42 = vld [vmem:[#allocation2 + $0xa8] sm:$0xff]
    %v43 = vld [vmem:[#allocation2 + $0xb0] sm:$0xff]
    %v44 = vld [vmem:[#allocation2 + $0xb8] sm:$0xff]
    %v45 = vld [vmem:[#allocation2 + $0xc0] sm:$0xff]
    %v46 = vld [vmem:[#allocation2 + $0xc8] sm:$0xff]
    %v47 = vld [vmem:[#allocation2 + $0xd0] sm:$0xff]
    %v48 = vld [vmem:[#allocation2 + $0xd8] sm:$0xff]
    %v49 = vld [vmem:[#allocation2 + $0xe0] sm:$0xff]
    %v50 = vld [vmem:[#allocation2 + $0xe8] sm:$0xff]
    %v51 = vld [vmem:[#allocation2 + $0xf0] sm:$0xff]
    %v52 = vld [vmem:[#allocation2 + $0xf8] sm:$0xff]
    %v53 = vld [vmem:[#allocation2 + $0x100] sm:$0xff]
    %v54 = vld [vmem:[#allocation2 + $0x108] sm:$0xff]
    %v55 = vld [vmem:[#allocation2 + $0x110] sm:$0xff]
    %v56 = vld [vmem:[#allocation2 + $0x118] sm:$0xff]
    %v57 = vld [vmem:[#allocation2 + $0x120] sm:$0xff]
    %v58 = vld [vmem:[#allocation2 + $0x128] sm:$0xff]
    %v59 = vld [vmem:[#allocation2 + $0x130] sm:$0xff]
    %v60 = vld [vmem:[#allocation2 + $0x138] sm:$0xff]
    %v61 = vld [vmem:[#allocation2 + $0x140] sm:$0xff]
    %v62 = vld [vmem:[#allocation2 + $0x148] sm:$0xff]
    %v63 = vld [vmem:[#allocation2 + $0x150] sm:$0xff]
    %v64 = vld [vmem:[#allocation2 + $0x158] sm:$0xff]
    %v65 = vld [vmem:[#allocation2 + $0x160] sm:$0xff]
    %v66 = vld [vmem:[#allocation2 + $0x168] sm:$0xff]
    %v67 = vld [vmem:[#allocation2 + $0x170] sm:$0xff]
    %v68 = vld [vmem:[#allocation2 + $0x178] sm:$0xff]
    %v69 = vld [vmem:[#allocation2 + $0x180] sm:$0xff]
    %v70 = vld [vmem:[#allocation2 + $0x188] sm:$0xff]
    %v71 = vld [vmem:[#allocation2 + $0x190] sm:$0xff]
    %v72 = vld [vmem:[#allocation2 + $0x198] sm:$0xff]
    %v73 = vld [vmem:[#allocation2 + $0x1a0] sm:$0xff]
    %v74 = vld [vmem:[#allocation2 + $0x1a8] sm:$0xff]
    %v75 = vld [vmem:[#allocation2 + $0x1b0] sm:$0xff]
    %v76 = vld [vmem:[#allocation2 + $0x1b8] sm:$0xff]
    %v77 = vld [vmem:[#allocation2 + $0x1c0] sm:$0xff]
    %v78 = vld [vmem:[#allocation2 + $0x1c8] sm:$0xff]
    %v79 = vld [vmem:[#allocation2 + $0x1d0] sm:$0xff]
    %v80 = vld [vmem:[#allocation2 + $0x1d8] sm:$0xff]
    %v81 = vld [vmem:[#allocation2 + $0x1e0] sm:$0xff]
    %v82 = vld [vmem:[#allocation2 + $0x1e8] sm:$0xff]
    %v83 = vld [vmem:[#allocation2 + $0x1f0] sm:$0xff]
    %v84 = vld [vmem:[#allocation2 + $0x1f8] sm:$0xff]
    %v85 = vld [vmem:[#allocation2 + $0x200] sm:$0xff]
    %v86 = vld [vmem:[#allocation2 + $0x208] sm:$0xff]
    %v87 = vld [vmem:[#allocation2 + $0x210] sm:$0xff]
    %v88 = vld [vmem:[#allocation2 + $0x218] sm:$0xff]
    %v89 = vld [vmem:[#allocation2 + $0x220] sm:$0xff]
    %v90 = vld [vmem:[#allocation2 + $0x228] sm:$0xff]
    %v91 = vld [vmem:[#allocation2 + $0x230] sm:$0xff]
    %v92 = vld [vmem:[#allocation2 + $0x238] sm:$0xff]
    %v93 = vld [vmem:[#allocation2 + $0x240] sm:$0xff]
    %v94 = vld [vmem:[#allocation2 + $0x248] sm:$0xff]
    %v95 = vld [vmem:[#allocation2 + $0x250] sm:$0xff]
    %v96 = vld [vmem:[#allocation2 + $0x258] sm:$0xff]
    %v97 = vld [vmem:[#allocation2 + $0x260] sm:$0xff]
    %v98 = vld [vmem:[#allocation2 + $0x268] sm:$0xff]
    %v99 = vld [vmem:[#allocation2 + $0x270] sm:$0xff]
    %v100 = vld [vmem:[#allocation2 + $0x278] sm:$0xff]
    %v101 = vld [vmem:[#allocation2 + $0x280] sm:$0xff]
    %v102 = vld [vmem:[#allocation2 + $0x288] sm:$0xff]
    %v103 = vld [vmem:[#allocation2 + $0x290] sm:$0xff]
    %v104 = vld [vmem:[#allocation2 + $0x298] sm:$0xff]
    %v105 = vld [vmem:[#allocation2 + $0x2a0] sm:$0xff]
    %v106 = vld [vmem:[#allocation2 + $0x2a8] sm:$0xff]
    %v107 = vld [vmem:[#allocation2 + $0x2b0] sm:$0xff]
    %v108 = vld [vmem:[#allocation2 + $0x2b8] sm:$0xff]
    %v109 = vld [vmem:[#allocation2 + $0x2c0] sm:$0xff]
    %v110 = vld [vmem:[#allocation2 + $0x2c8] sm:$0xff]
    %v111 = vld [vmem:[#allocation2 + $0x2d0] sm:$0xff]
    %v112 = vld [vmem:[#allocation2 + $0x2d8] sm:$0xff]
    %v113 = vld [vmem:[#allocation2 + $0x2e0] sm:$0xff]
    %v114 = vld [vmem:[#allocation2 + $0x2e8] sm:$0xff]
    %v115 = vld [vmem:[#allocation2 + $0x2f0] sm:$0xff]
    %v116 = vld [vmem:[#allocation2 + $0x2f8] sm:$0xff]
    %v117 = vld [vmem:[#allocation2 + $0x300] sm:$0xff]
    %v118 = vld [vmem:[#allocation2 + $0x308] sm:$0xff]
    %v119 = vld [vmem:[#allocation2 + $0x310] sm:$0xff]
    %v120 = vld [vmem:[#allocation2 + $0x318] sm:$0xff]
    %v121 = vld [vmem:[#allocation2 + $0x320] sm:$0xff]
    %v122 = vld [vmem:[#allocation2 + $0x328] sm:$0xff]
    %v123 = vld [vmem:[#allocation2 + $0x330] sm:$0xff]
    %v124 = vld [vmem:[#allocation2 + $0x338] sm:$0xff]
    %v125 = vld [vmem:[#allocation2 + $0x340] sm:$0xff]
    %v126 = vld [vmem:[#allocation2 + $0x348] sm:$0xff]
    %v127 = vld [vmem:[#allocation2 + $0x350] sm:$0xff]
    %v128 = vld [vmem:[#allocation2 + $0x358] sm:$0xff]
    %v129 = vld [vmem:[#allocation2 + $0x360] sm:$0xff]
    %v130 = vld [vmem:[#allocation2 + $0x368] sm:$0xff]
    %v131 = vld [vmem:[#allocation2 + $0x370] sm:$0xff]
    %v132 = vld [vmem:[#allocation2 + $0x378] sm:$0xff]
    %v133 = vld [vmem:[#allocation2 + $0x380] sm:$0xff]
    %v134 = vld [vmem:[#allocation2 + $0x388] sm:$0xff]
    %v135 = vld [vmem:[#allocation2 + $0x390] sm:$0xff]
    %v136 = vld [vmem:[#allocation2 + $0x398] sm:$0xff]
    %v137 = vld [vmem:[#allocation2 + $0x3a0] sm:$0xff]
    %v138 = vld [vmem:[#allocation2 + $0x3a8] sm:$0xff]
    %v139 = vld [vmem:[#allocation2 + $0x3b0] sm:$0xff]
    %v140 = vld [vmem:[#allocation2 + $0x3b8] sm:$0xff]
    %v141 = vld [vmem:[#allocation2 + $0x3c0] sm:$0xff]
    %v142 = vld [vmem:[#allocation2 + $0x3c8] sm:$0xff]
    %v143 = vld [vmem:[#allocation2 + $0x3d0] sm:$0xff]
    %v144 = vld [vmem:[#allocation2 + $0x3d8] sm:$0xff]
    %v145 = vld [vmem:[#allocation2 + $0x3e0] sm:$0xff]
    %v146 = vld [vmem:[#allocation2 + $0x3e8] sm:$0xff]
    %v147 = vld [vmem:[#allocation2 + $0x3f0] sm:$0xff]
    %v148 = vld [vmem:[#allocation2 + $0x3f8] sm:$0xff]
    %v149 = vld [vmem:[#allocation2 + $0x400] sm:$0xff]
    %v150 = vld [vmem:[#allocation2 + $0x408] sm:$0xff]
    %v151 = vld [vmem:[#allocation2 + $0x410] sm:$0xff]
    %v152 = vld [vmem:[#allocation2 + $0x418] sm:$0xff]
    %v153 = vld [vmem:[#allocation2 + $0x420] sm:$0xff]
    %v154 = vld [vmem:[#allocation2 + $0x428] sm:$0xff]
    %v155 = vld [vmem:[#allocation2 + $0x430] sm:$0xff]
    %v156 = vld [vmem:[#allocation2 + $0x438] sm:$0xff]
    %v157 = vld [vmem:[#allocation2 + $0x440] sm:$0xff]
    %v158 = vld [vmem:[#allocation2 + $0x448] sm:$0xff]
    %v159 = vld [vmem:[#allocation2 + $0x450] sm:$0xff]
    %v160 = vld [vmem:[#allocation2 + $0x458] sm:$0xff]
    %v161 = vld [vmem:[#allocation2 + $0x460] sm:$0xff]
    %v162 = vld [vmem:[#allocation2 + $0x468] sm:$0xff]
    %v163 = vld [vmem:[#allocation2 + $0x470] sm:$0xff]
    %v164 = vld [vmem:[#allocation2 + $0x478] sm:$0xff]
    %v165 = vld [vmem:[#allocation2 + $0x480] sm:$0xff]
    %v166 = vmax.f32 %v21, 0.0
    %v167 = vmax.f32 %v22, 0.0
    %v168 = vmax.f32 %v23, 0.0
    %v169 = vmax.f32 %v24, 0.0
    %v170 = vmax.f32 %v25, 0.0
    %v171 = vmax.f32 %v26, 0.0
    %v172 = vmax.f32 %v27, 0.0
    %v173 = vmax.f32 %v28, 0.0
    %v174 = vmax.f32 %v29, 0.0
    %v175 = vmax.f32 %v30, 0.0
    %v176 = vmax.f32 %v31, 0.0
    %v177 = vmax.f32 %v32, 0.0
    %v178 = vmax.f32 %v33, 0.0
    %v179 = vmax.f32 %v34, 0.0
    %v180 = vmax.f32 %v35, 0.0
    %v181 = vmax.f32 %v36, 0.0
    %v182 = vmax.f32 %v37, 0.0
    %v183 = vmax.f32 %v38, 0.0
    %v184 = vmax.f32 %v39, 0.0
    %v185 = vmax.f32 %v40, 0.0
    %v186 = vmax.f32 %v41, 0.0
    %v187 = vmax.f32 %v42, 0.0
    %v188 = vmax.f32 %v43, 0.0
    %v189 = vmax.f32 %v44, 0.0
    %v190 = vmax.f32 %v45, 0.0
    %v191 = vmax.f32 %v46, 0.0
    %v192 = vmax.f32 %v47, 0.0
    %v193 = vmax.f32 %v48, 0.0
    %v194 = vmax.f32 %v49, 0.0
    %v195 = vmax.f32 %v50, 0.0
    %v196 = vmax.f32 %v51, 0.0
    %v197 = vmax.f32 %v52, 0.0
    %v198 = vmax.f32 %v53, 0.0
    %v199 = vmax.f32 %v54, 0.0
    %v200 = vmax.f32 %v55, 0.0
    %v201 = vmax.f32 %v56, 0.0
    %v202 = vmax.f32 %v57, 0.0
    %v203 = vmax.f32 %v58, 0.0
    %v204 = vmax.f32 %v59, 0.0
    %v205 = vmax.f32 %v60, 0.0
    %v206 = vmax.f32 %v61, 0.0
    %v207 = vmax.f32 %v62, 0.0
    %v208 = vmax.f32 %v63, 0.0
    %v209 = vmax.f32 %v64, 0.0
    %v210 = vmax.f32 %v65, 0.0
    %v211 = vmax.f32 %v66, 0.0
    %v212 = vmax.f32 %v67, 0.0
    %v213 = vmax.f32 %v68, 0.0
    %v214 = vmax.f32 %v69, 0.0
    %v215 = vmax.f32 %v70, 0.0
    %v216 = vmax.f32 %v71, 0.0
    %v217 = vmax.f32 %v72, 0.0
    %v218 = vmax.f32 %v73, 0.0
    %v219 = vmax.f32 %v74, 0.0
    %v220 = vmax.f32 %v75, 0.0
    %v221 = vmax.f32 %v76, 0.0
    %v222 = vmax.f32 %v77, 0.0
    %v223 = vmax.f32 %v78, 0.0
    %v224 = vmax.f32 %v79, 0.0
    %v225 = vmax.f32 %v80, 0.0
    %v226 = vmax.f32 %v81, 0.0
    %v227 = vmax.f32 %v82, 0.0
    %v228 = vmax.f32 %v83, 0.0
    %v229 = vmax.f32 %v84, 0.0
    %v230 = vmax.f32 %v85, 0.0
    %v231 = vmax.f32 %v86, 0.0
    %v232 = vmax.f32 %v87, 0.0
    %v233 = vmax.f32 %v88, 0.0
    %v234 = vmax.f32 %v89, 0.0
    %v235 = vmax.f32 %v90, 0.0
    %v236 = vmax.f32 %v91, 0.0
    %v237 = vmax.f32 %v92, 0.0
    %v238 = vmax.f32 %v93, 0.0
    %v239 = vmax.f32 %v94, 0.0
    %v240 = vmax.f32 %v95, 0.0
    %v241 = vmax.f32 %v96, 0.0
    %v242 = vmax.f32 %v97, 0.0
    %v243 = vmax.f32 %v98, 0.0
    %v244 = vmax.f32 %v99, 0.0
    %v245 = vmax.f32 %v100, 0.0
    %v246 = vmax.f32 %v101, 0.0
    %v247 = vmax.f32 %v102, 0.0
    %v248 = vmax.f32 %v103, 0.0
    %v249 = vmax.f32 %v104, 0.0
    %v250 = vmax.f32 %v105, 0.0
    %v251 = vmax.f32 %v106, 0.0
    %v252 = vmax.f32 %v107, 0.0
    %v253 = vmax.f32 %v108, 0.0
    %v254 = vmax.f32 %v109, 0.0
    %v255 = vmax.f32 %v110, 0.0
    %v256 = vmax.f32 %v111, 0.0
    %v257 = vmax.f32 %v112, 0.0
    %v258 = vmax.f32 %v113, 0.0
    %v259 = vmax.f32 %v114, 0.0
    %v260 = vmax.f32 %v115, 0.0
    %v261 = vmax.f32 %v116, 0.0
    %v262 = vmax.f32 %v117, 0.0
    %v263 = vmax.f32 %v118, 0.0
    %v264 = vmax.f32 %v119, 0.0
    %v265 = vmax.f32 %v120, 0.0
    %v266 = vmax.f32 %v121, 0.0
    %v267 = vmax.f32 %v122, 0.0
    %v268 = vmax.f32 %v123, 0.0
    %v269 = vmax.f32 %v124, 0.0
    %v270 = vmax.f32 %v125, 0.0
    %v271 = vmax.f32 %v126, 0.0
    %v272 = vmax.f32 %v127, 0.0
    %v273 = vmax.f32 %v128, 0.0
    %v274 = vmax.f32 %v129, 0.0
    %v275 = vmax.f32 %v130, 0.0
    %v276 = vmax.f32 %v131, 0.0
    %v277 = vmax.f32 %v132, 0.0
    %v278 = vmax.f32 %v133, 0.0
    %v279 = vmax.f32 %v134, 0.0
    %v280 = vmax.f32 %v135, 0.0
    %v281 = vmax.f32 %v136, 0.0
    %v282 = vmax.f32 %v137, 0.0
    %v283 = vmax.f32 %v138, 0.0
    %v284 = vmax.f32 %v139, 0.0
    %v285 = vmax.f32 %v140, 0.0
    %v286 = vmax.f32 %v141, 0.0
    %v287 = vmax.f32 %v142, 0.0
    %v288 = vmax.f32 %v143, 0.0
    %v289 = vmax.f32 %v144, 0.0
    %v290 = vmax.f32 %v145, 0.0
    %v291 = vmax.f32 %v146, 0.0
    %v292 = vmax.f32 %v147, 0.0
    %v293 = vmax.f32 %v148, 0.0
    %v294 = vmax.f32 %v149, 0.0
    %v295 = vmax.f32 %v150, 0.0
    %v296 = vmax.f32 %v151, 0.0
    %v297 = vmax.f32 %v152, 0.0
    %v298 = vmax.f32 %v153, 0.0
    %v299 = vmax.f32 %v154, 0.0
    %v300 = vmax.f32 %v155, 0.0
    %v301 = vmax.f32 %v156, 0.0
    %v302 = vmax.f32 %v157, 0.0
    %v303 = vmax.f32 %v158, 0.0
    %v304 = vmax.f32 %v159, 0.0
    %v305 = vmax.f32 %v160, 0.0
    %v306 = vmax.f32 %v161, 0.0
    %v307 = vmax.f32 %v162, 0.0
    %v308 = vmax.f32 %v163, 0.0
    %v309 = vmax.f32 %v164, 0.0
    %v310 = vmax.f32 %v165, 0.0
    %311 = vst [vmem:[#allocation5] sm:$0xff] %v166
    %312 = vst [vmem:[#allocation5 + $0x8] sm:$0xff] %v167
    %313 = vst [vmem:[#allocation5 + $0x10] sm:$0xff] %v168
    %314 = vst [vmem:[#allocation5 + $0x18] sm:$0xff] %v169
    %315 = vst [vmem:[#allocation5 + $0x20] sm:$0xff] %v170
    %316 = vst [vmem:[#allocation5 + $0x28] sm:$0xff] %v171
    %317 = vst [vmem:[#allocation5 + $0x30] sm:$0xff] %v172
    %318 = vst [vmem:[#allocation5 + $0x38] sm:$0xff] %v173
    %319 = vst [vmem:[#allocation5 + $0x40] sm:$0xff] %v174
    %320 = vst [vmem:[#allocation5 + $0x48] sm:$0xff] %v175
    %321 = vst [vmem:[#allocation5 + $0x50] sm:$0xff] %v176
    %322 = vst [vmem:[#allocation5 + $0x58] sm:$0xff] %v177
    %323 = vst [vmem:[#allocation5 + $0x60] sm:$0xff] %v178
    %324 = vst [vmem:[#allocation5 + $0x68] sm:$0xff] %v179
    %325 = vst [vmem:[#allocation5 + $0x70] sm:$0xff] %v180
    %326 = vst [vmem:[#allocation5 + $0x78] sm:$0xff] %v181
    %327 = vst [vmem:[#allocation5 + $0x80] sm:$0xff] %v182
    %328 = vst [vmem:[#allocation5 + $0x88] sm:$0xff] %v183
    %329 = vst [vmem:[#allocation5 + $0x90] sm:$0xff] %v184
    %330 = vst [vmem:[#allocation5 + $0x98] sm:$0xff] %v185
    %331 = vst [vmem:[#allocation5 + $0xa0] sm:$0xff] %v186
    %332 = vst [vmem:[#allocation5 + $0xa8] sm:$0xff] %v187
    %333 = vst [vmem:[#allocation5 + $0xb0] sm:$0xff] %v188
    %334 = vst [vmem:[#allocation5 + $0xb8] sm:$0xff] %v189
    %335 = vst [vmem:[#allocation5 + $0xc0] sm:$0xff] %v190
    %336 = vst [vmem:[#allocation5 + $0xc8] sm:$0xff] %v191
    %337 = vst [vmem:[#allocation5 + $0xd0] sm:$0xff] %v192
    %338 = vst [vmem:[#allocation5 + $0xd8] sm:$0xff] %v193
    %339 = vst [vmem:[#allocation5 + $0xe0] sm:$0xff] %v194
    %340 = vst [vmem:[#allocation5 + $0xe8] sm:$0xff] %v195
    %341 = vst [vmem:[#allocation5 + $0xf0] sm:$0xff] %v196
    %342 = vst [vmem:[#allocation5 + $0xf8] sm:$0xff] %v197
    %343 = vst [vmem:[#allocation5 + $0x100] sm:$0xff] %v198
    %344 = vst [vmem:[#allocation5 + $0x108] sm:$0xff] %v199
    %345 = vst [vmem:[#allocation5 + $0x110] sm:$0xff] %v200
    %346 = vst [vmem:[#allocation5 + $0x118] sm:$0xff] %v201
    %347 = vst [vmem:[#allocation5 + $0x120] sm:$0xff] %v202
    %348 = vst [vmem:[#allocation5 + $0x128] sm:$0xff] %v203
    %349 = vst [vmem:[#allocation5 + $0x130] sm:$0xff] %v204
    %350 = vst [vmem:[#allocation5 + $0x138] sm:$0xff] %v205
    %351 = vst [vmem:[#allocation5 + $0x140] sm:$0xff] %v206
    %352 = vst [vmem:[#allocation5 + $0x148] sm:$0xff] %v207
    %353 = vst [vmem:[#allocation5 + $0x150] sm:$0xff] %v208
    %354 = vst [vmem:[#allocation5 + $0x158] sm:$0xff] %v209
    %355 = vst [vmem:[#allocation5 + $0x160] sm:$0xff] %v210
    %356 = vst [vmem:[#allocation5 + $0x168] sm:$0xff] %v211
    %357 = vst [vmem:[#allocation5 + $0x170] sm:$0xff] %v212
    %358 = vst [vmem:[#allocation5 + $0x178] sm:$0xff] %v213
    %359 = vst [vmem:[#allocation5 + $0x180] sm:$0xff] %v214
    %360 = vst [vmem:[#allocation5 + $0x188] sm:$0xff] %v215
    %361 = vst [vmem:[#allocation5 + $0x190] sm:$0xff] %v216
    %362 = vst [vmem:[#allocation5 + $0x198] sm:$0xff] %v217
    %363 = vst [vmem:[#allocation5 + $0x1a0] sm:$0xff] %v218
    %364 = vst [vmem:[#allocation5 + $0x1a8] sm:$0xff] %v219
    %365 = vst [vmem:[#allocation5 + $0x1b0] sm:$0xff] %v220
    %366 = vst [vmem:[#allocation5 + $0x1b8] sm:$0xff] %v221
    %367 = vst [vmem:[#allocation5 + $0x1c0] sm:$0xff] %v222
    %368 = vst [vmem:[#allocation5 + $0x1c8] sm:$0xff] %v223
    %369 = vst [vmem:[#allocation5 + $0x1d0] sm:$0xff] %v224
    %370 = vst [vmem:[#allocation5 + $0x1d8] sm:$0xff] %v225
    %371 = vst [vmem:[#allocation5 + $0x1e0] sm:$0xff] %v226
    %372 = vst [vmem:[#allocation5 + $0x1e8] sm:$0xff] %v227
    %373 = vst [vmem:[#allocation5 + $0x1f0] sm:$0xff] %v228
    %374 = vst [vmem:[#allocation5 + $0x1f8] sm:$0xff] %v229
    %375 = vst [vmem:[#allocation5 + $0x200] sm:$0xff] %v230
    %376 = vst [vmem:[#allocation5 + $0x208] sm:$0xff] %v231
    %377 = vst [vmem:[#allocation5 + $0x210] sm:$0xff] %v232
    %378 = vst [vmem:[#allocation5 + $0x218] sm:$0xff] %v233
    %379 = vst [vmem:[#allocation5 + $0x220] sm:$0xff] %v234
    %380 = vst [vmem:[#allocation5 + $0x228] sm:$0xff] %v235
    %381 = vst [vmem:[#allocation5 + $0x230] sm:$0xff] %v236
    %382 = vst [vmem:[#allocation5 + $0x238] sm:$0xff] %v237
    %383 = vst [vmem:[#allocation5 + $0x240] sm:$0xff] %v238
    %384 = vst [vmem:[#allocation5 + $0x248] sm:$0xff] %v239
    %385 = vst [vmem:[#allocation5 + $0x250] sm:$0xff] %v240
    %386 = vst [vmem:[#allocation5 + $0x258] sm:$0xff] %v241
    %387 = vst [vmem:[#allocation5 + $0x260] sm:$0xff] %v242
    %388 = vst [vmem:[#allocation5 + $0x268] sm:$0xff] %v243
    %389 = vst [vmem:[#allocation5 + $0x270] sm:$0xff] %v244
    %390 = vst [vmem:[#allocation5 + $0x278] sm:$0xff] %v245
    %391 = vst [vmem:[#allocation5 + $0x280] sm:$0xff] %v246
    %392 = vst [vmem:[#allocation5 + $0x288] sm:$0xff] %v247
    %393 = vst [vmem:[#allocation5 + $0x290] sm:$0xff] %v248
    %394 = vst [vmem:[#allocation5 + $0x298] sm:$0xff] %v249
    %395 = vst [vmem:[#allocation5 + $0x2a0] sm:$0xff] %v250
    %396 = vst [vmem:[#allocation5 + $0x2a8] sm:$0xff] %v251
    %397 = vst [vmem:[#allocation5 + $0x2b0] sm:$0xff] %v252
    %398 = vst [vmem:[#allocation5 + $0x2b8] sm:$0xff] %v253
    %399 = vst [vmem:[#allocation5 + $0x2c0] sm:$0xff] %v254
    %400 = vst [vmem:[#allocation5 + $0x2c8] sm:$0xff] %v255
    %401 = vst [vmem:[#allocation5 + $0x2d0] sm:$0xff] %v256
    %402 = vst [vmem:[#allocation5 + $0x2d8] sm:$0xff] %v257
    %403 = vst [vmem:[#allocation5 + $0x2e0] sm:$0xff] %v258
    %404 = vst [vmem:[#allocation5 + $0x2e8] sm:$0xff] %v259
    %405 = vst [vmem:[#allocation5 + $0x2f0] sm:$0xff] %v260
    %406 = vst [vmem:[#allocation5 + $0x2f8] sm:$0xff] %v261
    %407 = vst [vmem:[#allocation5 + $0x300] sm:$0xff] %v262
    %408 = vst [vmem:[#allocation5 + $0x308] sm:$0xff] %v263
    %409 = vst [vmem:[#allocation5 + $0x310] sm:$0xff] %v264
    %410 = vst [vmem:[#allocation5 + $0x318] sm:$0xff] %v265
    %411 = vst [vmem:[#allocation5 + $0x320] sm:$0xff] %v266
    %412 = vst [vmem:[#allocation5 + $0x328] sm:$0xff] %v267
    %413 = vst [vmem:[#allocation5 + $0x330] sm:$0xff] %v268
    %414 = vst [vmem:[#allocation5 + $0x338] sm:$0xff] %v269
    %415 = vst [vmem:[#allocation5 + $0x340] sm:$0xff] %v270
    %416 = vst [vmem:[#allocation5 + $0x348] sm:$0xff] %v271
    %417 = vst [vmem:[#allocation5 + $0x350] sm:$0xff] %v272
    %418 = vst [vmem:[#allocation5 + $0x358] sm:$0xff] %v273
    %419 = vst [vmem:[#allocation5 + $0x360] sm:$0xff] %v274
    %420 = vst [vmem:[#allocation5 + $0x368] sm:$0xff] %v275
    %421 = vst [vmem:[#allocation5 + $0x370] sm:$0xff] %v276
    %422 = vst [vmem:[#allocation5 + $0x378] sm:$0xff] %v277
    %423 = vst [vmem:[#allocation5 + $0x380] sm:$0xff] %v278
    %424 = vst [vmem:[#allocation5 + $0x388] sm:$0xff] %v279
    %425 = vst [vmem:[#allocation5 + $0x390] sm:$0xff] %v280
    %426 = vst [vmem:[#allocation5 + $0x398] sm:$0xff] %v281
    %427 = vst [vmem:[#allocation5 + $0x3a0] sm:$0xff] %v282
    %428 = vst [vmem:[#allocation5 + $0x3a8] sm:$0xff] %v283
    %429 = vst [vmem:[#allocation5 + $0x3b0] sm:$0xff] %v284
    %430 = vst [vmem:[#allocation5 + $0x3b8] sm:$0xff] %v285
    %431 = vst [vmem:[#allocation5 + $0x3c0] sm:$0xff] %v286
    %432 = vst [vmem:[#allocation5 + $0x3c8] sm:$0xff] %v287
    %433 = vst [vmem:[#allocation5 + $0x3d0] sm:$0xff] %v288
    %434 = vst [vmem:[#allocation5 + $0x3d8] sm:$0xff] %v289
    %435 = vst [vmem:[#allocation5 + $0x3e0] sm:$0xff] %v290
    %436 = vst [vmem:[#allocation5 + $0x3e8] sm:$0xff] %v291
    %437 = vst [vmem:[#allocation5 + $0x3f0] sm:$0xff] %v292
    %438 = vst [vmem:[#allocation5 + $0x3f8] sm:$0xff] %v293
    %439 = vst [vmem:[#allocation5 + $0x400] sm:$0xff] %v294
    %440 = vst [vmem:[#allocation5 + $0x408] sm:$0xff] %v295
    %441 = vst [vmem:[#allocation5 + $0x410] sm:$0xff] %v296
    %442 = vst [vmem:[#allocation5 + $0x418] sm:$0xff] %v297
    %443 = vst [vmem:[#allocation5 + $0x420] sm:$0xff] %v298
    %444 = vst [vmem:[#allocation5 + $0x428] sm:$0xff] %v299
    %445 = vst [vmem:[#allocation5 + $0x430] sm:$0xff] %v300
    %446 = vst [vmem:[#allocation5 + $0x438] sm:$0xff] %v301
    %447 = vst [vmem:[#allocation5 + $0x440] sm:$0xff] %v302
    %448 = vst [vmem:[#allocation5 + $0x448] sm:$0xff] %v303
    %449 = vst [vmem:[#allocation5 + $0x450] sm:$0xff] %v304
    %450 = vst [vmem:[#allocation5 + $0x458] sm:$0xff] %v305
    %451 = vst [vmem:[#allocation5 + $0x460] sm:$0xff] %v306
    %452 = vst [vmem:[#allocation5 + $0x468] sm:$0xff] %v307
    %453 = vst [vmem:[#allocation5 + $0x470] sm:$0xff] %v308
    %454 = vst [vmem:[#allocation5 + $0x478] sm:$0xff] %v309
    %vm455 = vcmask 736256
    %456 = vst.msk [vmem:[#allocation5 + $0x480] sm:$0xff] %vm455, %v310
    // Predicated region
    $region10: #{tpu_custom_call.1} parent=1 // pred_check
      _
    $region11: #{tpu_custom_call.1} parent=1 // pred_check_branch
      %458 = sbr.rel (0) target = $region13
    $region12: #{tpu_custom_call.1} parent=1 // pred_region
      %s460 = ssub.s32 18560, 18560
      %461 = vsyncadd [#allocation4], %s460
      %s463 = sshll.u32 [#allocation5], 4
      %s464 = int_to_ptr.vmem [resolvable:$true] %s463
      %466 = dma.vmem_to_hbm [thread:$0]  %s464, 18560, %s1, [#allocation4]
    $region13: #{tpu_custom_call.1} parent=1 // pred_fallthru
      _
    // Predicated region
    $region14: #{tpu_custom_call.1} parent=1 // pred_check
      _
    $region15: #{tpu_custom_call.1} parent=1 // pred_check_branch
      %468 = sbr.rel (0) target = $region17
    $region16: #{tpu_custom_call.1} parent=1 // pred_region
      %469 = dma.done [#allocation4], 18560
    $region17: #{tpu_custom_call.1} parent=1 // pred_fallthru
      _
    %470 = vsyncpa [#allocation3], 1
    %471 = vsyncpa [#allocation4], 1

</llo_original>
